<compile_context>
chip_gen: v7x
topology: tpu7x:2x2x1
jax: 0.10.0
libtpu: 0.0.40
codegen_flags: <defaults>
</compile_context>

<pallas_src>
import functools
import math

import jax
import jax.numpy as jnp
from jax.experimental import pallas as pl
from jax.experimental.pallas import tpu as pltpu


def _conv_relu_kernel(x_ref, w_ref, b_ref, o_ref, *, n_kh, h_out, wc_out):
    """One batch element per grid step.

    x_ref: (Hp, Wp*Cin)          bf16  spatially padded input, (W, Cin) flattened
    w_ref: (Wp*Cin, KH*W*Cout)   bf16  banded im2col weight, kh-major column groups
    b_ref: (1, W*Cout)           f32   bias tiled across W
    o_ref: (H, W*Cout)           f32   lane-dense output slab
    """
    # Single MXU push: (Hp, K) @ (K, KH*W*Cout), K = Wp*Cin, f32 accumulation.
    t = jnp.dot(x_ref[...], w_ref[...], preferred_element_type=jnp.float32)

    # Combine the KH row-shifted column groups: out[h] = sum_kh t[h+kh, group kh].
    # Lane offsets are 128-aligned; the two sublane-offset slices are cheap XLU work.
    acc = t[0:h_out, 0:wc_out]
    for kh in range(1, n_kh):
        acc = acc + t[kh:kh + h_out, kh * wc_out:(kh + 1) * wc_out]

    # Bias + ReLU in f32 on a 2-vreg slab, then one unmasked lane-dense store.
    acc = jnp.maximum(acc + b_ref[...], 0.0)
    o_ref[...] = acc.astype(o_ref.dtype)


def conv_relu_pallas(x_nchw, w_oihw, bias):
    """Conv2d(kernel=KHxKW, stride=1, padding=1) + ReLU.  x_nchw: (N, Cin, H, W)."""
    N, Cin, H, W = x_nchw.shape
    Cout, _, KH, KW = w_oihw.shape
    pad = 1
    Hp, Wp = H + 2 * pad, W + 2 * pad
    WC = W * Cout

    # ---- layout plumbing in plain JAX ----
    # Input: NCHW -> NHWC -> zero-pad spatially -> flatten (W, Cin) onto lanes.
    x_nhwc = jnp.transpose(x_nchw, (0, 2, 3, 1))
    x_pad = jnp.pad(x_nhwc, ((0, 0), (pad, pad), (pad, pad), (0, 0)))
    x_flat = x_pad.reshape(N, Hp, Wp * Cin).astype(jnp.bfloat16)

    # Banded weight: band[kh, (w+kw)*Cin + c, w*Cout + o] = w_oihw[o, c, kh, kw].
    # Columns are grouped kh-major -> (Wp*Cin, KH*W*Cout).
    w_hwio = jnp.transpose(w_oihw, (2, 3, 1, 0)).astype(jnp.float32)      # (KH, KW, Cin, Cout)
    sel = (jnp.arange(Wp)[None, :, None] ==
           (jnp.arange(W)[None, None, :] + jnp.arange(KW)[:, None, None])
           ).astype(jnp.float32)                                          # (KW, Wp, W)
    band = jnp.einsum('akco,ksw->ascwo', w_hwio, sel)                     # (KH, Wp, Cin, W, Cout)
    band = band.reshape(KH, Wp * Cin, WC)
    w_band = jnp.transpose(band, (1, 0, 2)).reshape(Wp * Cin, KH * WC).astype(jnp.bfloat16)

    b_tiled = jnp.tile(bias.astype(jnp.float32), W).reshape(1, WC)

    kernel = functools.partial(_conv_relu_kernel, n_kh=KH, h_out=H, wc_out=WC)

    out_flat = pl.pallas_call(
        kernel,
        out_shape=jax.ShapeDtypeStruct((N, H, WC), x_nchw.dtype),
        grid_spec=pltpu.PrefetchScalarGridSpec(
            num_scalar_prefetch=0,
            grid=(N,),
            in_specs=[
                pl.BlockSpec((None, Hp, Wp * Cin), lambda n: (n, 0, 0)),
                pl.BlockSpec((Wp * Cin, KH * WC), lambda n: (0, 0)),
                pl.BlockSpec((1, WC), lambda n: (0, 0)),
            ],
            out_specs=pl.BlockSpec((None, H, WC), lambda n: (n, 0, 0)),
        ),
        compiler_params=pltpu.CompilerParams(
            dimension_semantics=("parallel",),
        ),
    )(x_flat, w_band, b_tiled)

    # (N, H, W*Cout) -> (N, H, W, Cout) -> NCHW
    return jnp.transpose(out_flat.reshape(N, H, W, Cout), (0, 3, 1, 2))


if __name__ == "__main__":
    # Small shapes consistent with the module's forward (NCHW conv + ReLU).
    N, Cin, H, W = 2, 4, 16, 16
    Cout, K = 8, 3

    key = jax.random.PRNGKey(0)
    kx, kw = jax.random.split(key)
    x = jax.random.normal(kx, (N, Cin, H, W), dtype=jnp.float32)

    # Deterministic Kaiming-normal init (mode='fan_out', nonlinearity='relu'):
    # std = sqrt(2 / fan_out), fan_out = Cout * K * K;  bias = 0.
    fan_out = Cout * K * K
    std = math.sqrt(2.0 / fan_out)
    weight = std * jax.random.normal(kw, (Cout, Cin, K, K), dtype=jnp.float32)
    bias = jnp.zeros((Cout,), dtype=jnp.float32)

    out = jax.block_until_ready(jax.jit(conv_relu_pallas)(x, weight, bias))
    assert out.shape == (N, Cout, H, W)

    # Reference with the same bf16 operand quantization the kernel feeds the MXU
    # (accumulation is f32 in both); semantics match nn.Conv2d(pad=1) + ReLU.
    xq = x.astype(jnp.bfloat16).astype(jnp.float32)
    wq = weight.astype(jnp.bfloat16).astype(jnp.float32)
    ref = jax.lax.conv_general_dilated(
        xq, wq, window_strides=(1, 1), padding=((1, 1), (1, 1)),
        dimension_numbers=("NCHW", "OIHW", "NCHW"),
    ) + bias.reshape(1, Cout, 1, 1)
    ref = jnp.maximum(ref, 0.0)
    assert jnp.allclose(out, ref, atol=1e-3, rtol=1e-3), float(jnp.max(jnp.abs(out - ref)))

    print("KERNEL_OK")
</pallas_src>

<mosaic_0001>
module attributes {stable_mosaic.version = 11 : i64} {
  func.func @_conv_relu_kernel(%arg0: i32, %arg1: memref<1x18x72xbf16, #tpu.memory_space<vmem>>, %arg2: memref<72x384xbf16, #tpu.memory_space<vmem>>, %arg3: memref<1x128xf32, #tpu.memory_space<vmem>>, %arg4: memref<1x16x128xf32, #tpu.memory_space<vmem>>) attributes {dimension_semantics = [#tpu.dimension_semantics<parallel>], iteration_bounds = array<i64: 2>, scalar_prefetch = 0 : i64, scratch_operands = 0 : i64, tpu.core_type = #tpu.core_type<tc>, window_params = [{transform_indices = @transform_0, window_bounds = array<i64: 1, 18, 72>}, {pipeline_mode = #tpu.pipeline_mode<synchronous>, transform_indices = @transform_1, window_bounds = array<i64: 72, 384>}, {pipeline_mode = #tpu.pipeline_mode<synchronous>, transform_indices = @transform_2, window_bounds = array<i64: 1, 128>}, {transform_indices = @transform_3, window_bounds = array<i64: 1, 16, 128>}]} {
    %c0 = arith.constant 0 : index
    %c0_0 = arith.constant 0 : index
    %c0_1 = arith.constant 0 : index
    %0 = vector.load %arg1[%c0, %c0_0, %c0_1] : memref<1x18x72xbf16, #tpu.memory_space<vmem>>, vector<1x18x72xbf16>
    %1 = vector.shape_cast %0 : vector<1x18x72xbf16> to vector<18x72xbf16>
    %c0_2 = arith.constant 0 : index
    %c0_3 = arith.constant 0 : index
    %2 = vector.load %arg2[%c0_2, %c0_3] : memref<72x384xbf16, #tpu.memory_space<vmem>>, vector<72x384xbf16>
    %cst = arith.constant dense<0.000000e+00> : vector<18x384xf32>
    %3 = tpu.matmul %1, %2, %cst {dimension_numbers = #tpu.dot_dimension_numbers<[1], [0], [0], [1], [0, 0, 1, 1], [], []>} : vector<18x72xbf16>, vector<72x384xbf16>, vector<18x384xf32> -> vector<18x384xf32>
    %4 = vector.extract_strided_slice %3 {offsets = [0, 0], sizes = [16, 128], strides = [1, 1]} : vector<18x384xf32> to vector<16x128xf32>
    %5 = vector.extract_strided_slice %3 {offsets = [1, 128], sizes = [16, 128], strides = [1, 1]} : vector<18x384xf32> to vector<16x128xf32>
    %6 = arith.addf %4, %5 : vector<16x128xf32>
    %7 = vector.extract_strided_slice %3 {offsets = [2, 256], sizes = [16, 128], strides = [1, 1]} : vector<18x384xf32> to vector<16x128xf32>
    %8 = arith.addf %6, %7 : vector<16x128xf32>
    %c0_4 = arith.constant 0 : index
    %c0_5 = arith.constant 0 : index
    %9 = vector.load %arg3[%c0_4, %c0_5] : memref<1x128xf32, #tpu.memory_space<vmem>>, vector<1x128xf32>
    %10 = vector.broadcast %9 : vector<1x128xf32> to vector<16x128xf32>
    %11 = arith.addf %8, %10 : vector<16x128xf32>
    %cst_6 = arith.constant 0.000000e+00 : f32
    %12 = vector.broadcast %cst_6 : f32 to vector<16x128xf32>
    %13 = arith.maximumf %11, %12 : vector<16x128xf32>
    %c0_7 = arith.constant 0 : index
    %c0_8 = arith.constant 0 : index
    %c0_9 = arith.constant 0 : index
    %14 = vector.load %arg4[%c0_7, %c0_8, %c0_9] : memref<1x16x128xf32, #tpu.memory_space<vmem>>, vector<1x16x128xf32>
    %15 = vector.shape_cast %14 : vector<1x16x128xf32> to vector<16x128xf32>
    %16 = vector.shape_cast %13 : vector<16x128xf32> to vector<1x16x128xf32>
    tpu.vector_store %arg4[%c0_7, %c0_8, %c0_9], %16 {strides = array<i32>} : memref<1x16x128xf32, #tpu.memory_space<vmem>>, vector<1x16x128xf32>,
    return
  }
  func.func @transform_0(%arg0: i32) -> (i32, i32, i32) {
    %c0_i32 = arith.constant 0 : i32
    %c0_i32_0 = arith.constant 0 : i32
    %c0_i32_1 = arith.constant 0 : i32
    return %arg0, %c0_i32, %c0_i32_0 : i32, i32, i32
  }
  func.func @transform_1(%arg0: i32) -> (i32, i32) {
    %c0_i32 = arith.constant 0 : i32
    %c0_i32_0 = arith.constant 0 : i32
    %c0_i32_1 = arith.constant 0 : i32
    return %c0_i32, %c0_i32_0 : i32, i32
  }
  func.func @transform_2(%arg0: i32) -> (i32, i32) {
    %c0_i32 = arith.constant 0 : i32
    %c0_i32_0 = arith.constant 0 : i32
    %c0_i32_1 = arith.constant 0 : i32
    return %c0_i32, %c0_i32_0 : i32, i32
  }
  func.func @transform_3(%arg0: i32) -> (i32, i32, i32) {
    %c0_i32 = arith.constant 0 : i32
    %c0_i32_0 = arith.constant 0 : i32
    %c0_i32_1 = arith.constant 0 : i32
    return %arg0, %c0_i32, %c0_i32_0 : i32, i32, i32
  }
}

</mosaic_0001>

<llo_original>
// kernel: tile.8
$region0: #{tile.8}
  #allocation0 [shape = 's32[1]{0}', space=sflag, size = 0x4, scoped, tag = 'scoped memory for tile.8']
  %s0 = inlined_call_operand.vmem [shape: f32[8], index: 0, kind: input, shape index: {}]
  %s1 = inlined_call_operand.vmem [shape: f32[16,8], index: 1, kind: output, shape index: {}]
  // Predicated region
  $region2: #{tile.8} parent=0 // pred_check
    _
  $region3: #{tile.8} parent=0 // pred_check_branch
    %3 = sbr.rel (0) target = $region5
  $region4: #{tile.8} parent=0 // pred_region
    _
  $region5: #{tile.8} parent=0 // pred_fallthru
    _
  %v4 = vld [vmem:[%s0] ss:$0 sm:$0xff]
  %5 = vst [vmem:[%s1] sm:$0xff] %v4
  %s6 = scalar_lea.vmem %s1, 8
  %7 = vst [vmem:[%s6] sm:$0xff] %v4

// kernel: tile.9
$region0: #{tile.9}
  %s0 = inlined_call_operand.vmem [shape: f32[16,8], index: 0, kind: input, shape index: {}]
  %s1 = inlined_call_operand.vmem [shape: f32[1,128], index: 1, kind: output, shape index: {}]
  $region1: #{tile.9} parent=0
    #allocation0 [shape = 'u8[4096]{0}', space=vmem, size = 0x1000, scoped, tag = 'scoped mem for output reshape']
    %v2 = vld [vmem:[%s0] sm:$0x1]
    %vm3 = vcmask 64512
    %4 = vst.msk [vmem:[#allocation0] sm:$0x1] %vm3, %v2
    %s5 = scalar_lea.vmem %s0, 15
    %v6 = vld [vmem:[%s5] sm:$0x1]
    %7 = vrot.lane.b32.xlu0 %v6, 120
    %v8 = vpop.permute.xlu0 %7
    %vm9 = vcmask 1048512
    %10 = vst.msk [vmem:[#allocation0] sm:$0x1] %vm9, %v8
    %s11 = scalar_lea.vmem %s0, 14
    %v12 = vld [vmem:[%s11] sm:$0x1]
    %13 = vrot.lane.b32.xlu0 %v12, 112
    %v14 = vpop.permute.xlu0 %13
    %vm15 = vcmask 982912
    %16 = vst.msk [vmem:[#allocation0] sm:$0x1] %vm15, %v14
    %s17 = scalar_lea.vmem %s0, 13
    %v18 = vld [vmem:[%s17] sm:$0x1]
    %19 = vrot.lane.b32.xlu0 %v18, 104
    %v20 = vpop.permute.xlu0 %19
    %vm21 = vcmask 917312
    %22 = vst.msk [vmem:[#allocation0] sm:$0x1] %vm21, %v20
    %s23 = scalar_lea.vmem %s0, 12
    %v24 = vld [vmem:[%s23] sm:$0x1]
    %25 = vrot.lane.b32.xlu0 %v24, 96
    %v26 = vpop.permute.xlu0 %25
    %vm27 = vcmask 851712
    %28 = vst.msk [vmem:[#allocation0] sm:$0x1] %vm27, %v26
    %s29 = scalar_lea.vmem %s0, 11
    %v30 = vld [vmem:[%s29] sm:$0x1]
    %31 = vrot.lane.b32.xlu0 %v30, 88
    %v32 = vpop.permute.xlu0 %31
    %vm33 = vcmask 786112
    %34 = vst.msk [vmem:[#allocation0] sm:$0x1] %vm33, %v32
    %s35 = scalar_lea.vmem %s0, 10
    %v36 = vld [vmem:[%s35] sm:$0x1]
    %37 = vrot.lane.b32.xlu0 %v36, 80
    %v38 = vpop.permute.xlu0 %37
    %vm39 = vcmask 720512
    %40 = vst.msk [vmem:[#allocation0] sm:$0x1] %vm39, %v38
    %s41 = scalar_lea.vmem %s0, 9
    %v42 = vld [vmem:[%s41] sm:$0x1]
    %43 = vrot.lane.b32.xlu0 %v42, 72
    %v44 = vpop.permute.xlu0 %43
    %vm45 = vcmask 654912
    %46 = vst.msk [vmem:[#allocation0] sm:$0x1] %vm45, %v44
    %s47 = scalar_lea.vmem %s0, 8
    %v48 = vld [vmem:[%s47] sm:$0x1]
    %49 = vrot.lane.b32.xlu0 %v48, 64
    %v50 = vpop.permute.xlu0 %49
    %vm51 = vcmask 589312
    %52 = vst.msk [vmem:[#allocation0] sm:$0x1] %vm51, %v50
    %s53 = scalar_lea.vmem %s0, 7
    %v54 = vld [vmem:[%s53] sm:$0x1]
    %55 = vrot.lane.b32.xlu0 %v54, 56
    %v56 = vpop.permute.xlu0 %55
    %vm57 = vcmask 523712
    %58 = vst.msk [vmem:[#allocation0] sm:$0x1] %vm57, %v56
    %s59 = scalar_lea.vmem %s0, 6
    %v60 = vld [vmem:[%s59] sm:$0x1]
    %61 = vrot.lane.b32.xlu0 %v60, 48
    %v62 = vpop.permute.xlu0 %61
    %vm63 = vcmask 458112
    %64 = vst.msk [vmem:[#allocation0] sm:$0x1] %vm63, %v62
    %s65 = scalar_lea.vmem %s0, 5
    %v66 = vld [vmem:[%s65] sm:$0x1]
    %67 = vrot.lane.b32.xlu0 %v66, 40
    %v68 = vpop.permute.xlu0 %67
    %vm69 = vcmask 392512
    %70 = vst.msk [vmem:[#allocation0] sm:$0x1] %vm69, %v68
    %s71 = scalar_lea.vmem %s0, 4
    %v72 = vld [vmem:[%s71] sm:$0x1]
    %73 = vrot.lane.b32.xlu0 %v72, 32
    %v74 = vpop.permute.xlu0 %73
    %vm75 = vcmask 326912
    %76 = vst.msk [vmem:[#allocation0] sm:$0x1] %vm75, %v74
    %s77 = scalar_lea.vmem %s0, 3
    %v78 = vld [vmem:[%s77] sm:$0x1]
    %79 = vrot.lane.b32.xlu0 %v78, 24
    %v80 = vpop.permute.xlu0 %79
    %vm81 = vcmask 261312
    %82 = vst.msk [vmem:[#allocation0] sm:$0x1] %vm81, %v80
    %s83 = scalar_lea.vmem %s0, 2
    %v84 = vld [vmem:[%s83] sm:$0x1]
    %85 = vrot.lane.b32.xlu0 %v84, 16
    %v86 = vpop.permute.xlu0 %85
    %vm87 = vcmask 195712
    %88 = vst.msk [vmem:[#allocation0] sm:$0x1] %vm87, %v86
    %s89 = scalar_lea.vmem %s0, 1
    %v90 = vld [vmem:[%s89] sm:$0x1]
    %91 = vrot.lane.b32.xlu0 %v90, 8
    %v92 = vpop.permute.xlu0 %91
    %vm93 = vcmask 130112
    %94 = vst.msk [vmem:[#allocation0] sm:$0x1] %vm93, %v92
    %s96 = sshllo.u32 0, 1
    %v98 = vld [vmem:[#allocation0] sm:%s96]
    %s99 = sshllo.u32 0, 1
    %100 = vst [vmem:[%s1] sm:%s99] %v98

// kernel: conv_relu_pallas.1
$region0: #{conv_relu_pallas.1}
  #allocation0 [shape = 'u32[]', space=smem, size = 0x4, offset = 0x4, fixed_abs, tag = 'smem constant byte address 0x4 - core index']
  #allocation1 [shape = 'u32[144,128]{1,0:T(1,128)}', space=vmem, size = 0x12000, scoped, tag = 'internal scratch']
  %s0 = inlined_call_operand.vmem [shape: bf16[2,18,72], index: 0, kind: input, shape index: {}]
  %s1 = inlined_call_operand.vmem [shape: bf16[72,384], index: 1, kind: input, shape index: {}]
  %s2 = inlined_call_operand.vmem [shape: f32[1,128], index: 2, kind: input, shape index: {}]
  %s3 = inlined_call_operand.vmem [shape: f32[2,16,128], index: 3, kind: output, shape index: {}]
  %s4 = sld [smem:[#allocation0]]
  $region45: #{conv_relu_pallas.1} parent=0
    _
  %s6 = ssub.s32 1, %s4
  %s7 = scalar_select 0, %s6, %s4
  loop: start=0, step=1, limit=4
  $region2: #{conv_relu_pallas.1} parent=0 // loop_pre_header
    _
  $region3: #{conv_relu_pallas.1} parent=0 // loop_header
    %s9 = sphi 0, %s13
    %p10 = scmp.ge.s32.totalorder %s9, 4
    %s19 = sphi 0, %s21
    %s22 = sphi 0, %s19
    %s23 = sphi 0, %s22
    %s39 = sphi 0, %s23
    %s43 = sphi 0, %s43
    %s45 = sphi 0, %s43
    %s46 = sphi 0, %s45
    %s60 = sphi 0, %s46
    %s64 = sphi 0, %s64
    %s66 = sphi 0, %s64
    %s67 = sphi 0, %s66
    %s81 = sphi 0, %s67
    %s87 = sphi 0, %s89
    %s90 = sphi 0, %s87
    %s91 = sphi 0, %s90
    %s107 = sphi 0, %s91
  $region4: #{conv_relu_pallas.1} parent=0 // loop_header_branch
    %12 = sbr.rel (%p10) target = $region8
  $region5: #{conv_relu_pallas.1} parent=0 // loop_body
    %s14 = ssub.s32 %s9, 1
    %s15 = ssub.s32 %s9, 2
    %s16 = sadd.s32 %s9, 1
    %s17 = ssub.s32 %s9, %s16
    %p18 = scmp.eq.s32.totalorder %s17, 0
    %s20 = sadd.s32 %s19, 1
    %s21 = scalar_select %p18, %s19, %s20
    %p24 = pneg %p18
    %p25 = scmp.eq.s32.totalorder %s9, 1
    %p26 = por %p24, %p25
    %p27 = scmp.ne.s32.totalorder %s19, %s22
    %p28 = scmp.eq.s32.totalorder %s9, 0
    %p29 = por %p27, %p28
    %p30 = scmp.ne.s32.totalorder %s19, %s22
    %p31 = scmp.eq.s32.totalorder %s14, 1
    %p32 = por %p30, %p31
    %p33 = scmp.ne.s32.totalorder %s22, %s23
    %p34 = scmp.eq.s32.totalorder %s14, 0
    %p35 = por %p33, %p34
    %p36 = scmp.ne.s32.totalorder %s22, %s23
    %p37 = scmp.eq.s32.totalorder %s15, 1
    %p38 = por %p36, %p37
    %p40 = scmp.ne.s32.totalorder %s23, %s39
    %p41 = scmp.eq.s32.totalorder %s15, 0
    %p42 = por %p40, %p41
    %s44 = sadd.s32 %s43, 1
    %p47 = scmp.eq.s32.totalorder %s9, 1
    %p48 = scmp.ne.s32.totalorder %s43, %s45
    %p49 = scmp.eq.s32.totalorder %s9, 0
    %p50 = por %p48, %p49
    %p51 = scmp.ne.s32.totalorder %s43, %s45
    %p52 = scmp.eq.s32.totalorder %s14, 1
    %p53 = por %p51, %p52
    %p54 = scmp.ne.s32.totalorder %s45, %s46
    %p55 = scmp.eq.s32.totalorder %s14, 0
    %p56 = por %p54, %p55
    %p57 = scmp.ne.s32.totalorder %s45, %s46
    %p58 = scmp.eq.s32.totalorder %s15, 1
    %p59 = por %p57, %p58
    %p61 = scmp.ne.s32.totalorder %s46, %s60
    %p62 = scmp.eq.s32.totalorder %s15, 0
    %p63 = por %p61, %p62
    %s65 = sadd.s32 %s64, 1
    %p68 = scmp.eq.s32.totalorder %s9, 1
    %p69 = scmp.ne.s32.totalorder %s64, %s66
    %p70 = scmp.eq.s32.totalorder %s9, 0
    %p71 = por %p69, %p70
    %p72 = scmp.ne.s32.totalorder %s64, %s66
    %p73 = scmp.eq.s32.totalorder %s14, 1
    %p74 = por %p72, %p73
    %p75 = scmp.ne.s32.totalorder %s66, %s67
    %p76 = scmp.eq.s32.totalorder %s14, 0
    %p77 = por %p75, %p76
    %p78 = scmp.ne.s32.totalorder %s66, %s67
    %p79 = scmp.eq.s32.totalorder %s15, 1
    %p80 = por %p78, %p79
    %p82 = scmp.ne.s32.totalorder %s67, %s81
    %p83 = scmp.eq.s32.totalorder %s15, 0
    %p84 = por %p82, %p83
    %s85 = ssub.s32 %s9, %s16
    %p86 = scmp.eq.s32.totalorder %s85, 0
    %s88 = sadd.s32 %s87, 1
    %s89 = scalar_select %p86, %s87, %s88
    %p92 = pneg %p86
    %p93 = scmp.eq.s32.totalorder %s9, 1
    %p94 = por %p92, %p93
    %p95 = scmp.ne.s32.totalorder %s87, %s90
    %p96 = scmp.eq.s32.totalorder %s9, 0
    %p97 = por %p95, %p96
    %p98 = scmp.ne.s32.totalorder %s87, %s90
    %p99 = scmp.eq.s32.totalorder %s14, 1
    %p100 = por %p98, %p99
    %p101 = scmp.ne.s32.totalorder %s90, %s91
    %p102 = scmp.eq.s32.totalorder %s14, 0
    %p103 = por %p101, %p102
    %p104 = scmp.ne.s32.totalorder %s90, %s91
    %p105 = scmp.eq.s32.totalorder %s15, 1
    %p106 = por %p104, %p105
    %p108 = scmp.ne.s32.totalorder %s91, %s107
    %p109 = scmp.eq.s32.totalorder %s15, 0
    %p110 = por %p108, %p109
    %p111 = scmp.le.s32.totalorder 1, %s9
    %p112 = scmp.lt.s32.totalorder %s9, 3
    %p113 = pnand %p111, %p112
    %p114 = pneg %p113
    // Predicated region
    $region9: #{conv_relu_pallas.1} parent=5 // pred_check
      _
    $region10: #{conv_relu_pallas.1} parent=5 // pred_check_branch
      %116 = sbr.rel (%p113) target = $region12
    $region11: #{conv_relu_pallas.1} parent=5 // pred_region
      %s117 = ssub.s32 %s9, 1
      // Predicated region
      $region13: #{conv_relu_pallas.1} parent=11 // pred_check
        %p118 = pneg %p56
      $region14: #{conv_relu_pallas.1} parent=11 // pred_check_branch
        %120 = sbr.rel (%p118) target = $region16
      $region15: #{conv_relu_pallas.1} parent=11 // pred_region
        _
      $region16: #{conv_relu_pallas.1} parent=11 // pred_fallthru
        _
      // Predicated region
      $region17: #{conv_relu_pallas.1} parent=11 // pred_check
        %p121 = pneg %p77
      $region18: #{conv_relu_pallas.1} parent=11 // pred_check_branch
        %123 = sbr.rel (%p121) target = $region20
      $region19: #{conv_relu_pallas.1} parent=11 // pred_region
        _
      $region20: #{conv_relu_pallas.1} parent=11 // pred_fallthru
        _
    $region12: #{conv_relu_pallas.1} parent=5 // pred_fallthru
      _
    %p124 = scmp.lt.s32.totalorder %s9, 2
    // Predicated region
    $region21: #{conv_relu_pallas.1} parent=5 // pred_check
      %p125 = pneg %p124
    $region22: #{conv_relu_pallas.1} parent=5 // pred_check_branch
      %127 = sbr.rel (%p125) target = $region24
    $region23: #{conv_relu_pallas.1} parent=5 // pred_region
      // Predicated region
      $region25: #{conv_relu_pallas.1} parent=23 // pred_check
        %p128 = pneg %p29
      $region26: #{conv_relu_pallas.1} parent=23 // pred_check_branch
        %130 = sbr.rel (%p128) target = $region28
      $region27: #{conv_relu_pallas.1} parent=23 // pred_region
        %p131 = scmp.lt.s32.totalorder %s9, 1
        %s132 = scalar_select %p131, %s9, 1
        %s133 = smul.addr %s132, 3
        %s134 = smul.addr %s133, 4
        %s135 = scalar_lea.vmem %s0, %s134
      $region28: #{conv_relu_pallas.1} parent=23 // pred_fallthru
        _
    $region24: #{conv_relu_pallas.1} parent=5 // pred_fallthru
      _
    %p136 = scmp.le.s32.totalorder 1, %s9
    %p137 = scmp.lt.s32.totalorder %s9, 3
    %p138 = pnand %p136, %p137
    %p139 = pneg %p138
    // Predicated region
    $region29: #{conv_relu_pallas.1} parent=5 // pred_check
      _
    $region30: #{conv_relu_pallas.1} parent=5 // pred_check_branch
      %141 = sbr.rel (%p138) target = $region32
    $region31: #{conv_relu_pallas.1} parent=5 // pred_region
      %s142 = ssub.s32 %s9, 1
      %p143 = scmp.lt.s32.totalorder %s14, 1
      %s144 = scalar_select %p143, %s14, 1
      %s145 = smul.addr %s144, 3
      %s146 = smul.addr %s145, 4
      %s147 = scalar_lea.vmem %s0, %s146
      %p148 = pneg %p35
      %p149 = pneg %p32
      %p150 = pneg %p56
      %p151 = pneg %p53
      %p152 = pneg %p77
      %p153 = pneg %p74
      %p154 = pneg %p103
      %p155 = pneg %p100
      %p156 = scmp.lt.s32.totalorder %s14, 1
      %s157 = scalar_select %p156, %s14, 1
      %s158 = smul.addr %s157, 2
      %s159 = smul.addr %s158, 8
      %s160 = scalar_lea.vmem %s3, %s159
      %p161 = scmp.lt.s32.totalorder %s14, 1
      %s162 = scalar_select %p161, %s14, 1
      %s163 = smul.addr %s162, 3
      %s164 = smul.addr %s163, 4
      %s165 = scalar_lea.vmem %s0, %s164
      %p166 = scmp.lt.s32.totalorder %s14, 1
      %s167 = scalar_select %p166, %s14, 1
      %s168 = smul.addr %s167, 2
      %s169 = smul.addr %s168, 8
      %s170 = scalar_lea.vmem %s3, %s169
      %v172 = vld [vmem:[%s165] sm:$0xf]
      %v173 = vld [vmem:[%s165 + $0x4] sm:$0xf]
      %v174 = vld [vmem:[%s165 + $0x8] sm:$0x1]
      %v175 = vld [vmem:[%s1] sm:$0xff]
      %v176 = vld [vmem:[%s1 + $0x8] sm:$0xf]
      %v177 = vld [vmem:[%s1 + $0xc] sm:$0xff]
      %v178 = vld [vmem:[%s1 + $0x14] sm:$0xf]
      %v179 = vld [vmem:[%s1 + $0x18] sm:$0xff]
      %v180 = vld [vmem:[%s1 + $0x20] sm:$0xf]
      %v181 = vld [vmem:[%s1 + $0x24] sm:$0xff]
      %v182 = vld [vmem:[%s1 + $0x2c] sm:$0xf]
      %v183 = vld [vmem:[%s1 + $0x30] sm:$0xff]
      %v184 = vld [vmem:[%s1 + $0x38] sm:$0xf]
      %v185 = vld [vmem:[%s1 + $0x3c] sm:$0xff]
      %v186 = vld [vmem:[%s1 + $0x44] sm:$0xf]
      %v187 = vld [vmem:[%s1 + $0x48] sm:$0xff]
      %v188 = vld [vmem:[%s1 + $0x50] sm:$0xf]
      %v189 = vld [vmem:[%s1 + $0x54] sm:$0xff]
      %v190 = vld [vmem:[%s1 + $0x5c] sm:$0xf]
      %v191 = vld [vmem:[%s1 + $0x60] sm:$0xff]
      %v192 = vld [vmem:[%s1 + $0x68] sm:$0xf]
      %v196 = vunpack.c.l.b16 %v172
      %v197 = vunpack.c.l.b16 %v173
      %v198 = vunpack.c.l.b16 %v174
      %v199 = vpack.c.b16 %v197, %v196
      %v200 = vpack.c.b16 %v198, %v198
      %v219 = vunpack.c.l.b16 %v175
      %v220 = vunpack.c.h.b16 %v175
      %v221 = vunpack.c.l.b16 %v176
      %v222 = vunpack.c.l.b16 %v177
      %v223 = vunpack.c.h.b16 %v177
      %v224 = vunpack.c.l.b16 %v178
      %v225 = vunpack.c.l.b16 %v179
      %v226 = vunpack.c.h.b16 %v179
      %v227 = vunpack.c.l.b16 %v180
      %v228 = vunpack.c.l.b16 %v181
      %v229 = vunpack.c.h.b16 %v181
      %v230 = vunpack.c.l.b16 %v182
      %v231 = vunpack.c.l.b16 %v183
      %v232 = vunpack.c.h.b16 %v183
      %v233 = vunpack.c.l.b16 %v184
      %v234 = vunpack.c.l.b16 %v185
      %v235 = vunpack.c.h.b16 %v185
      %v236 = vunpack.c.l.b16 %v186
      %v237 = vunpack.c.l.b16 %v187
      %v238 = vunpack.c.h.b16 %v187
      %v239 = vunpack.c.l.b16 %v188
      %v240 = vunpack.c.l.b16 %v189
      %v241 = vunpack.c.h.b16 %v189
      %v242 = vunpack.c.l.b16 %v190
      %v243 = vunpack.c.l.b16 %v191
      %v244 = vunpack.c.h.b16 %v191
      %v245 = vunpack.c.l.b16 %v192
      %v246 = vpack.c.b16 %v222, %v219
      %v247 = vpack.c.b16 %v223, %v220
      %v248 = vpack.c.b16 %v224, %v221
      %v249 = vpack.c.b16 %v228, %v225
      %v250 = vpack.c.b16 %v229, %v226
      %v251 = vpack.c.b16 %v230, %v227
      %v252 = vpack.c.b16 %v234, %v231
      %v253 = vpack.c.b16 %v235, %v232
      %v254 = vpack.c.b16 %v236, %v233
      %v255 = vpack.c.b16 %v240, %v237
      %v256 = vpack.c.b16 %v241, %v238
      %v257 = vpack.c.b16 %v242, %v239
      %v258 = vpack.c.b16 %v243, %v243
      %v259 = vpack.c.b16 %v244, %v244
      %v260 = vpack.c.b16 %v245, %v245
      %vm273 = vcmask 588800
      %v275 = vsel %vm273, %v199, 0
      %v278 = vsel %vm273, %v200, 0
      %vm280 = vcmask 1043456
      %v282 = vsel %vm280, %v258, 0
      %v285 = vsel %vm280, %v259, 0
      %v288 = vsel %vm280, %v260, 0
      %290 = vmatprep.subr.bf16.mxu0 %v247
      %291 = vmatpush1.bf16.msra.mxu0 %v246
      %292 = vmatprep.subr.bf16.mxu0 %v250
      %293 = vmatpush1.bf16.msra.mxu0 %v249
      %294 = vmatprep.subr.bf16.mxu0 %v253
      %295 = vmatpush1.bf16.msra.mxu0 %v252
      %296 = vmatprep.subr.bf16.mxu0 %v256
      %297 = vmatpush1.bf16.msra.mxu0 %v255
      %298 = vmatprep.subr.bf16.mxu0 %v285
      %299 = vmatpush1.bf16.msra.mxu0 %v282
      %300 = vmatprep.subr.bf16.mxu0 0
      %301 = vmatpush1.bf16.msra.mxu0 0
      %302 = vmatprep.subr.bf16.mxu0 0
      %303 = vmatpush1.bf16.msra.mxu0 0
      %304 = vmatprep.subr.bf16.mxu0 0
      %305 = vmatpush1.bf16.msra.mxu0 0
      %306 = vmatprep.subr.bf16.mxu0 0
      %307 = vmatpush1.bf16.msra.mxu0 0
      %308 = vmatprep.subr.bf16.mxu0 0
      %309 = vmatpush1.bf16.msra.mxu0 0
      %310 = vmatprep.subr.bf16.mxu0 0
      %311 = vmatpush1.bf16.msra.mxu0 0
      %312 = vmatprep.subr.bf16.mxu0 0
      %313 = vmatpush1.bf16.msra.mxu0 0
      %314 = vmatprep.subr.bf16.mxu0 0
      %315 = vmatpush1.bf16.msra.mxu0 0
      %316 = vmatprep.subr.bf16.mxu0 0
      %317 = vmatpush1.bf16.msra.mxu0 0
      %318 = vmatprep.subr.bf16.mxu0 0
      %319 = vmatpush1.bf16.msra.mxu0 0
      %320 = vmatprep.subr.bf16.mxu0 0
      %321 = vmatpush1.bf16.msra.mxu0 0
      %322 = vmatprep.mubr.bf16.mxu0 0
      %323 = vmatmul.mubr.bf16.gmra.mrb[0].mxu0 %v275
      %v324 = vpop.f32.mrb[0].mxu0
      %v325 = vadd.f32 0.0, %v324
      %v326 = vpop.f32.mrb[0].mxu0
      %v327 = vadd.f32 0.0, %v326
      %v328 = vpop.f32.mrb[0].mxu0
      %v329 = vadd.f32 0.0, %v328
      %v330 = vpop.f32.mrb[0].mxu0
      %v331 = vadd.f32 0.0, %v330
      %332 = vmatprep.mubr.bf16.mxu0 0
      %333 = vmatmul.mubr.bf16.gmra.mrb[0].mxu0 %v278
      %v334 = vpop.f32.mrb[0].mxu0
      %v335 = vpop.f32.mrb[0].mxu0
      %v336 = vadd.f32 0.0, %v335
      %v337 = vpop.f32.mrb[0].mxu0
      %v338 = vpop.f32.mrb[0].mxu0
      %339 = vdwg.mxu0
      %340 = vmatprep.subr.bf16.mxu0 0
      %341 = vmatpush1.bf16.msra.mxu0 %v248
      %342 = vmatprep.subr.bf16.mxu0 0
      %343 = vmatpush1.bf16.msra.mxu0 %v251
      %344 = vmatprep.subr.bf16.mxu0 0
      %345 = vmatpush1.bf16.msra.mxu0 %v254
      %346 = vmatprep.subr.bf16.mxu0 0
      %347 = vmatpush1.bf16.msra.mxu0 %v257
      %348 = vmatprep.subr.bf16.mxu0 0
      %349 = vmatpush1.bf16.msra.mxu0 %v288
      %350 = vmatprep.subr.bf16.mxu0 0
      %351 = vmatpush1.bf16.msra.mxu0 0
      %352 = vmatprep.subr.bf16.mxu0 0
      %353 = vmatpush1.bf16.msra.mxu0 0
      %354 = vmatprep.subr.bf16.mxu0 0
      %355 = vmatpush1.bf16.msra.mxu0 0
      %356 = vmatprep.subr.bf16.mxu0 0
      %357 = vmatpush1.bf16.msra.mxu0 0
      %358 = vmatprep.subr.bf16.mxu0 0
      %359 = vmatpush1.bf16.msra.mxu0 0
      %360 = vmatprep.subr.bf16.mxu0 0
      %361 = vmatpush1.bf16.msra.mxu0 0
      %362 = vmatprep.subr.bf16.mxu0 0
      %363 = vmatpush1.bf16.msra.mxu0 0
      %364 = vmatprep.subr.bf16.mxu0 0
      %365 = vmatpush1.bf16.msra.mxu0 0
      %366 = vmatprep.subr.bf16.mxu0 0
      %367 = vmatpush1.bf16.msra.mxu0 0
      %368 = vmatprep.subr.bf16.mxu0 0
      %369 = vmatpush1.bf16.msra.mxu0 0
      %370 = vmatprep.subr.bf16.mxu0 0
      %371 = vmatpush1.bf16.msra.mxu0 0
      %372 = vmatprep.mubr.bf16.mxu0 0
      %373 = vmatmul.mubr.bf16.gmra.mrb[0].mxu0 %v275
      %v374 = vpop.f32.mrb[0].mxu0
      %v375 = vadd.f32 0.0, %v374
      %v376 = vpop.f32.mrb[0].mxu0
      %v377 = vpop.f32.mrb[0].mxu0
      %v378 = vadd.f32 0.0, %v377
      %v379 = vpop.f32.mrb[0].mxu0
      %380 = vmatprep.mubr.bf16.mxu0 0
      %381 = vmatmul.mubr.bf16.gmra.mrb[0].mxu0 %v278
      %v382 = vpop.f32.mrb[0].mxu0
      %v383 = vadd.f32 0.0, %v382
      %v384 = vpop.f32.mrb[0].mxu0
      %v385 = vpop.f32.mrb[0].mxu0
      %v386 = vpop.f32.mrb[0].mxu0
      %387 = vdwg.mxu0
      %vm391 = vcmask 1046528
      %v392 = vrot.slane %v327, 1
      %v393 = vrot.slane %v331, 1
      %v394 = vsel %vm391, %v392, %v393
      %v395 = vrot.slane %v336, 1
      %v396 = vsel %vm391, %v393, %v395
      %v399 = vadd.f32 %v325, %v394
      %v400 = vadd.f32 %v329, %v396
      %vm404 = vcmask 1045504
      %v405 = vrot.slane %v375, 2
      %v406 = vrot.slane %v378, 2
      %v407 = vsel %vm404, %v405, %v406
      %v408 = vrot.slane %v383, 2
      %v409 = vsel %vm404, %v406, %v408
      %v412 = vadd.f32 %v399, %v407
      %v413 = vadd.f32 %v400, %v409
      %v414 = vld [vmem:[%s2] sm:$0x1]
      %v416 = vlaneseq
      %v417 = vshrl.u32 %v416, 7
      %v418 = vsub.s32 0, %v417
      %v419 = vrot.slane %v414, %v418
      %v421 = vadd.f32 %v412, %v419
      %v422 = vadd.f32 %v413, %v419
      %v423 = vmax.f32 %v421, 0.0
      %v424 = vmax.f32 %v422, 0.0
      %425 = vst [vmem:[%s170] sm:$0xff] %v423
      %426 = vst [vmem:[%s170 + $0x8] sm:$0xff] %v424
      %p427 = scmp.lt.s32.totalorder %s14, 1
      %s428 = scalar_select %p427, %s14, 1
      %s429 = smul.addr %s428, 2
      %s430 = smul.addr %s429, 8
      %s431 = scalar_lea.vmem %s3, %s430
      // Predicated region
      $region33: #{conv_relu_pallas.1} parent=31 // pred_check
        %p432 = pneg %p100
      $region34: #{conv_relu_pallas.1} parent=31 // pred_check_branch
        %434 = sbr.rel (%p432) target = $region36
      $region35: #{conv_relu_pallas.1} parent=31 // pred_region
        _
      $region36: #{conv_relu_pallas.1} parent=31 // pred_fallthru
        _
    $region32: #{conv_relu_pallas.1} parent=5 // pred_fallthru
      _
    %p435 = scmp.le.s32.totalorder 2, %s9
    // Predicated region
    $region37: #{conv_relu_pallas.1} parent=5 // pred_check
      %p436 = pneg %p435
    $region38: #{conv_relu_pallas.1} parent=5 // pred_check_branch
      %438 = sbr.rel (%p436) target = $region40
    $region39: #{conv_relu_pallas.1} parent=5 // pred_region
      %s439 = ssub.s32 %s9, 2
      // Predicated region
      $region41: #{conv_relu_pallas.1} parent=39 // pred_check
        %p440 = pneg %p106
      $region42: #{conv_relu_pallas.1} parent=39 // pred_check_branch
        %442 = sbr.rel (%p440) target = $region44
      $region43: #{conv_relu_pallas.1} parent=39 // pred_region
        %p443 = scmp.lt.s32.totalorder %s15, 1
        %s444 = scalar_select %p443, %s15, 1
        %s445 = smul.addr %s444, 2
        %s446 = smul.addr %s445, 8
        %s447 = scalar_lea.vmem %s3, %s446
      $region44: #{conv_relu_pallas.1} parent=39 // pred_fallthru
        _
    $region40: #{conv_relu_pallas.1} parent=5 // pred_fallthru
      _
  $region6: #{conv_relu_pallas.1} parent=0 // loop_footer
    %s13 = sadd.s32 1, %s9
  $region7: #{conv_relu_pallas.1} parent=0 // loop_footer_branch
    %8 = sbr.rel target = $region3
  $region8: #{conv_relu_pallas.1} parent=0 // loop_exit
    _

</llo_original>
